<compile_context>
chip_gen: v7x
topology: tpu7x:2x2x1
jax: 0.10.0
libtpu: 0.0.40
codegen_flags: <defaults>
</compile_context>

<pallas_src>
import functools
import math

import jax
import jax.numpy as jnp
from jax import lax
from jax.experimental import pallas as pl
from jax.experimental.pallas import tpu as pltpu


def _pad_tiled_kernel(x_ref, o_ref, *, l_in, tile_l, fill):
    """Lane-tiled path. x_ref/o_ref are (TR, TL) blocks with TL % 128 == 0.

    Output column tile j covers global output columns [j*TL, (j+1)*TL).  The
    input BlockSpec clamps j into the input's tile range, so any column < l_in
    in this tile lines up with the loaded input block; columns >= l_in are the
    constant fill.
    """
    j = pl.program_id(1)
    col = j * tile_l + lax.broadcasted_iota(jnp.int32, o_ref.shape, 1)
    x = x_ref[...].astype(o_ref.dtype)
    fill_v = jnp.asarray(fill, dtype=o_ref.dtype)
    o_ref[...] = jnp.where(col < l_in, x, fill_v)


def _pad_small_kernel(x_ref, o_ref, *, l_in, l_out, fill):
    """Small-output path: full-length blocks (TR, L_in) -> (TR, L_out)."""
    copy_w = min(l_in, l_out)
    o_ref[:, :copy_w] = x_ref[:, :copy_w].astype(o_ref.dtype)
    if l_out > copy_w:  # static
        o_ref[:, copy_w:] = jnp.full(
            (o_ref.shape[0], l_out - copy_w), fill, dtype=o_ref.dtype)


def pad(x: jax.Array,
        series_length: int,
        fill=0.0,
        padding_mode: str = "constant",
        *,
        block_rows: int = 256,
        block_l: int = 512) -> jax.Array:
    """Pad the last axis of `x` to `series_length` (constant mode)."""
    if padding_mode != "constant":
        raise NotImplementedError(
            "only 'constant' padding_mode is implemented in the Pallas kernel")

    l_in = x.shape[-1]
    l_out = int(series_length)
    lead = x.shape[:-1]
    r = math.prod(lead) if lead else 1
    x2 = x.reshape(r, l_in)

    # Row (sublane) tile: multiple of 8, or the full (small) extent.
    if r <= 8:
        tr = r
    else:
        tr = 8 * min(r // 8, max(block_rows // 8, 1))

    if l_out >= 128:
        # Lane-dense tiled path.
        tl_cap = max(128, (block_l // 128) * 128)
        tl = min(tl_cap, (l_out // 128) * 128)
        n_in_tiles = max(pl.cdiv(l_in, tl), 1)
        grid = (pl.cdiv(r, tr), pl.cdiv(l_out, tl))
        kernel = functools.partial(
            _pad_tiled_kernel, l_in=l_in, tile_l=tl, fill=fill)
        in_specs = [
            pl.BlockSpec((tr, tl),
                         lambda i, j: (i, jnp.minimum(j, n_in_tiles - 1))),
        ]
        out_specs = pl.BlockSpec((tr, tl), lambda i, j: (i, j))
        dims = ("parallel", "parallel")
    else:
        # Tiny output length: one full-length block per row tile.
        grid = (pl.cdiv(r, tr),)
        kernel = functools.partial(
            _pad_small_kernel, l_in=l_in, l_out=l_out, fill=fill)
        in_specs = [pl.BlockSpec((tr, l_in), lambda i: (i, 0))]
        out_specs = pl.BlockSpec((tr, l_out), lambda i: (i, 0))
        dims = ("parallel",)

    out2 = pl.pallas_call(
        kernel,
        out_shape=jax.ShapeDtypeStruct((r, l_out), x.dtype),
        grid_spec=pltpu.PrefetchScalarGridSpec(
            num_scalar_prefetch=0,
            grid=grid,
            in_specs=in_specs,
            out_specs=out_specs,
        ),
        compiler_params=pltpu.CompilerParams(dimension_semantics=dims),
    )(x2)

    return out2.reshape(*lead, l_out)


if __name__ == "__main__":
    key = jax.random.PRNGKey(0)

    # Case 1: toy shape, small-output path (series_length < 128).
    N, C, L = 2, 4, 16
    series_length = 64
    x = jax.random.normal(key, (N, C, L), dtype=jnp.float32)
    out = jax.block_until_ready(pad(x, series_length))
    ref = jnp.pad(x, ((0, 0), (0, 0), (0, series_length - L)),
                  constant_values=0.0)
    assert out.shape == (N, C, series_length) and out.dtype == x.dtype
    assert jnp.array_equal(out, ref)

    # Case 2: lane-tiled path (128-wide output tiles, clamped input tiles,
    # non-zero fill, non-aligned input length).
    L2, series_length2, fill2 = 100, 256, 1.5
    x2 = jax.random.normal(jax.random.PRNGKey(0), (N, C, L2),
                           dtype=jnp.float32)
    out2 = jax.block_until_ready(
        pad(x2, series_length2, fill=fill2, block_l=128))
    ref2 = jnp.pad(x2, ((0, 0), (0, 0), (0, series_length2 - L2)),
                   constant_values=fill2)
    assert out2.shape == (N, C, series_length2) and out2.dtype == x2.dtype
    assert jnp.array_equal(out2, ref2)

    print("KERNEL_OK")
</pallas_src>

<mosaic_0001>
module attributes {stable_mosaic.version = 11 : i64} {
  func.func @_pad_small_kernel(%arg0: i32, %arg1: memref<8x16xf32, #tpu.memory_space<vmem>>, %arg2: memref<8x64xf32, #tpu.memory_space<vmem>>) attributes {dimension_semantics = [#tpu.dimension_semantics<parallel>], iteration_bounds = array<i64: 1>, scalar_prefetch = 0 : i64, scratch_operands = 0 : i64, tpu.core_type = #tpu.core_type<tc>, window_params = [{transform_indices = @transform_0, window_bounds = array<i64: 8, 16>}, {transform_indices = @transform_1, window_bounds = array<i64: 8, 64>}]} {
    %c0 = arith.constant 0 : index
    %c0_0 = arith.constant 0 : index
    %0 = vector.load %arg1[%c0, %c0_0] : memref<8x16xf32, #tpu.memory_space<vmem>>, vector<8x16xf32>
    %c0_1 = arith.constant 0 : index
    %c0_2 = arith.constant 0 : index
    %1 = vector.load %arg2[%c0_1, %c0_2] : memref<8x64xf32, #tpu.memory_space<vmem>>, vector<8x16xf32>
    tpu.vector_store %arg2[%c0_1, %c0_2], %0 {strides = array<i32>} : memref<8x64xf32, #tpu.memory_space<vmem>>, vector<8x16xf32>,
    %cst = arith.constant 0.000000e+00 : f32
    %2 = vector.broadcast %cst : f32 to vector<8x48xf32>
    %c0_3 = arith.constant 0 : index
    %c16 = arith.constant 16 : index
    %3 = vector.load %arg2[%c0_3, %c16] : memref<8x64xf32, #tpu.memory_space<vmem>>, vector<8x48xf32>
    tpu.vector_store %arg2[%c0_3, %c16], %2 {strides = array<i32>} : memref<8x64xf32, #tpu.memory_space<vmem>>, vector<8x48xf32>,
    return
  }
  func.func @transform_0(%arg0: i32) -> (i32, i32) {
    %c0_i32 = arith.constant 0 : i32
    %c0_i32_0 = arith.constant 0 : i32
    return %arg0, %c0_i32 : i32, i32
  }
  func.func @transform_1(%arg0: i32) -> (i32, i32) {
    %c0_i32 = arith.constant 0 : i32
    %c0_i32_0 = arith.constant 0 : i32
    return %arg0, %c0_i32 : i32, i32
  }
}

</mosaic_0001>

<llo_original>
// kernel: tpu_custom_call.1
$region0: #{tpu_custom_call.1}
  #allocation0 [shape = 'u32[]', space=smem, size = 0x4, offset = 0x4, fixed_abs, tag = 'smem constant byte address 0x4 - core index']
  #allocation1 [shape = 'u32[144,128]{1,0:T(1,128)}', space=vmem, size = 0x12000, scoped, tag = 'internal scratch']
  %s0 = inlined_call_operand.hbm [shape: f32[8,16], index: 0, kind: input, shape index: {}]
  %s1 = inlined_call_operand.hbm [shape: f32[8,64], index: 1, kind: output, shape index: {}]
  %s2 = sld [smem:[#allocation0]]
  $region18: #{tpu_custom_call.1} parent=0
    _
  %s4 = ssub.s32 1, %s2
  %s5 = scalar_select 0, %s4, %s2
  $region1: #{tpu_custom_call.1} parent=0
    #allocation2 [shape = 'u8[4096]{0}', space=vmem, size = 0x1000, scoped, tag = 'input window, operand 0, single buffered']
    #allocation3 [shape = 's32[1]{0}', space=sflag, size = 0x4, scoped, tag = 'scoped memory for tpu_custom_call.1']
    #allocation4 [shape = 's32[1]{0}', space=sflag, size = 0x4, scoped, tag = 'scoped memory for tpu_custom_call.1']
    #allocation5 [shape = 'u8[4096]{0}', space=vmem, size = 0x1000, scoped, tag = 'output window, operand 0, single buffered']
    %6 = vsyncpa [#allocation3], 0
    %7 = vsyncpa [#allocation4], 0
    // Predicated region
    $region2: #{tpu_custom_call.1} parent=1 // pred_check
      _
    $region3: #{tpu_custom_call.1} parent=1 // pred_check_branch
      %9 = sbr.rel (0) target = $region5
    $region4: #{tpu_custom_call.1} parent=1 // pred_region
      %s11 = ssub.s32 128, 128
      %12 = vsyncadd [#allocation3], %s11
      %s14 = sshll.u32 [#allocation2], 4
      %s15 = int_to_ptr.vmem [resolvable:$true] %s14
      %17 = dma.hbm_to_vmem [thread:$0]  %s0, 128, %s15, [#allocation3]
    $region5: #{tpu_custom_call.1} parent=1 // pred_fallthru
      _
    // Predicated region
    $region6: #{tpu_custom_call.1} parent=1 // pred_check
      _
    $region7: #{tpu_custom_call.1} parent=1 // pred_check_branch
      %19 = sbr.rel (0) target = $region9
    $region8: #{tpu_custom_call.1} parent=1 // pred_region
      %20 = dma.done [#allocation3], 128
    $region9: #{tpu_custom_call.1} parent=1 // pred_fallthru
      _
    %v21 = vld [vmem:[#allocation2] sm:$0xff]
    %vm22 = vcmask 130048
    %23 = vst.msk [vmem:[#allocation5] sm:$0xff] %vm22, %v21
    %vm24 = vcmask 523392
    %25 = vst.msk [vmem:[#allocation5] sm:$0xff] %vm24, 0.0
    // Predicated region
    $region10: #{tpu_custom_call.1} parent=1 // pred_check
      _
    $region11: #{tpu_custom_call.1} parent=1 // pred_check_branch
      %27 = sbr.rel (0) target = $region13
    $region12: #{tpu_custom_call.1} parent=1 // pred_region
      %s29 = ssub.s32 128, 128
      %30 = vsyncadd [#allocation4], %s29
      %s32 = sshll.u32 [#allocation5], 4
      %s33 = int_to_ptr.vmem [resolvable:$true] %s32
      %35 = dma.vmem_to_hbm [thread:$0]  %s33, 128, %s1, [#allocation4]
    $region13: #{tpu_custom_call.1} parent=1 // pred_fallthru
      _
    // Predicated region
    $region14: #{tpu_custom_call.1} parent=1 // pred_check
      _
    $region15: #{tpu_custom_call.1} parent=1 // pred_check_branch
      %37 = sbr.rel (0) target = $region17
    $region16: #{tpu_custom_call.1} parent=1 // pred_region
      %38 = dma.done [#allocation4], 128
    $region17: #{tpu_custom_call.1} parent=1 // pred_fallthru
      _
    %39 = vsyncpa [#allocation3], 1
    %40 = vsyncpa [#allocation4], 1

</llo_original>
